<compile_context>
chip_gen: v7x
topology: tpu7x:2x2x1
jax: 0.10.0
libtpu: 0.0.40
codegen_flags: <defaults>
</compile_context>

<pallas_src>
import jax
import jax.numpy as jnp
from jax.experimental import pallas as pl
from jax.experimental.pallas import tpu as pltpu


# ----------------------------------------------------------------------------
# Pallas kernel: full Attention forward for one batch tile
# ----------------------------------------------------------------------------
def _attention_kernel(ctx_ref, att_ref, mask_ref,
                      wc_ref, bc_ref, wa_ref, ba_ref, wal_ref,
                      wp_ref, bp_ref, o_ref):
    Bt, Tp, H = att_ref.shape

    att = att_ref[...]                                    # (Bt, Tp, H) bf16
    att2d = att.reshape(Bt * Tp, H)                       # layout no-op (Tp % 16 == 0)

    # fc_ctx / fc_att (Dropout(0.5) is identity at inference). bf16 MXU, f32 accumulate.
    hc = jnp.tanh(jnp.dot(ctx_ref[...], wc_ref[...],
                          preferred_element_type=jnp.float32) + bc_ref[...])       # (Bt, A) f32
    ha = jnp.tanh(jnp.dot(att2d, wa_ref[...],
                          preferred_element_type=jnp.float32) + ba_ref[...])       # (Bt*Tp, A) f32

    # alpha_net(hc * ha): fold the (A,1) alpha_net weight into the ctx branch (exact).
    # The scalar alpha_net bias is dropped — a per-row constant cancels under softmax.
    g = hc * wal_ref[...]                                 # (Bt, A) f32
    A = g.shape[1]
    logits = jnp.sum(g[:, None, :] * ha.reshape(Bt, Tp, A), axis=2)   # (Bt, Tp), lane reduce

    # softmax over T fused with the PyTorch mask renormalisation:
    #   softmax(l)*m / sum(softmax(l)*m) == exp(l - max)*m / sum(exp(l - max)*m)
    logits = logits - jnp.max(logits, axis=1, keepdims=True)
    p = jnp.exp(logits) * mask_ref[...]                   # (Bt, Tp) unnormalised weights
    denom = jnp.maximum(jnp.sum(p, axis=1, keepdims=True), 1e-30)     # guard all-zero mask rows
    w = p * pl.reciprocal(denom, approx=False)            # (Bt, Tp) normalised weights

    # torch.bmm(alpha.unsqueeze(1), att).squeeze(1): per-row weighted sum over T.
    # VPU mul + sublane reduce; avoids the O(block_b^2) block-diagonal matmul.
    ctx2 = jnp.sum(w[:, :, None] * att.astype(jnp.float32), axis=1)   # (Bt, H) f32

    # proj
    out = jnp.tanh(jnp.dot(ctx2.astype(wp_ref.dtype), wp_ref[...],
                           preferred_element_type=jnp.float32) + bp_ref[...])
    o_ref[...] = out.astype(o_ref.dtype)


# ----------------------------------------------------------------------------
# Tiling / VMEM heuristics
# ----------------------------------------------------------------------------
def _vmem_limit_bytes():
    """3/4 of physical VMEM (96 MiB on v5e/v6e, 48 MiB on v7x), capped at 100 MiB."""
    try:
        cap = pltpu.get_tpu_info().vmem_capacity_bytes
        return int(min(3 * cap // 4, 100 * 1024 * 1024))
    except Exception:
        return 48 * 1024 * 1024


def _pick_block_b(B, Tp, H, A, want):
    """Largest power-of-two batch tile (>=8) that (a) does not exceed the requested size,
    (b) fits a ~40 MB VMEM working-set budget (safe on v7x's 64 MiB), and (c) keeps the
    grid >= 2 steps whenever the batch allows it (megacore / 2 TCs, pipeline overlap)."""
    Bp8 = pl.cdiv(max(B, 1), 8) * 8
    budget = 40 * 1024 * 1024
    weights = (2 * H * A + H * H) * 2 + (2 * A + H) * 4

    def footprint(b):
        # double-buffered bf16 att tile + f32 att temp + f32 ha + small per-row vectors
        return b * (Tp * H * (2 * 2 + 4) + Tp * A * 4 + 12 * H + 12 * Tp + 8 * A) + weights

    bb = 8
    for cand in (16, 32, 64, 128, 256):
        if cand > want or cand > Bp8:
            break
        if footprint(cand) > budget:
            break
        if pl.cdiv(Bp8, cand) < 2:
            break
        bb = cand
    return bb


# ----------------------------------------------------------------------------
# Wrapper: batch-tiled pallas_call
# ----------------------------------------------------------------------------
def attention_pallas(ctx, att, mask, params, *, block_b=128, compute_dtype=jnp.bfloat16):
    """ctx (B,E), att (B,T,E), mask (B,T) or None -> (B,E) f32."""
    B, T, H = att.shape
    A = params["wc_t"].shape[1]

    if mask is None:
        # renormalising by sum(softmax)==1 is a no-op -> identical to the unmasked path
        mask = jnp.ones((B, T), jnp.float32)
    else:
        mask = mask[:, :T].astype(jnp.float32)            # mirrors mask[:, :alpha.size(1)]

    ctx = ctx.astype(compute_dtype)
    att = att.astype(compute_dtype)

    # Pad T to the sublane-packing multiple (16 for bf16, 8 for f32) so the in-kernel
    # (Bt,T,H)<->(Bt*T,H) reshapes stay layout no-ops. Padded positions carry mask == 0.
    t_mult = 16 if compute_dtype == jnp.bfloat16 else 8
    Tp = pl.cdiv(T, t_mult) * t_mult
    if Tp != T:
        att = jnp.pad(att, ((0, 0), (0, Tp - T), (0, 0)))
        mask = jnp.pad(mask, ((0, 0), (0, Tp - T)))       # padded columns masked out

    # Pick the batch tile and pad the batch. Padded rows get mask == 1 so the softmax
    # denominator stays finite; they are sliced off below.
    bb = _pick_block_b(B, Tp, H, A, block_b)
    Bp = pl.cdiv(B, bb) * bb
    if Bp != B:
        ctx = jnp.pad(ctx, ((0, Bp - B), (0, 0)))
        att = jnp.pad(att, ((0, Bp - B), (0, 0), (0, 0)))
        mask = jnp.pad(mask, ((0, Bp - B), (0, 0)), constant_values=1.0)

    # MXU operands in bf16; biases / alpha_net weight stay f32 (VPU adds / muls).
    wc = params["wc_t"].astype(compute_dtype)
    wa = params["wa_t"].astype(compute_dtype)
    wp = params["wp_t"].astype(compute_dtype)
    bc = params["bc"].astype(jnp.float32)
    ba = params["ba"].astype(jnp.float32)
    wal = params["wal"].astype(jnp.float32)
    bp = params["bp"].astype(jnp.float32)

    batch2 = lambda i: (i, 0)
    batch3 = lambda i: (i, 0, 0)
    const2 = lambda i: (0, 0)

    out = pl.pallas_call(
        _attention_kernel,
        out_shape=jax.ShapeDtypeStruct((Bp, H), jnp.float32),
        grid_spec=pltpu.PrefetchScalarGridSpec(
            num_scalar_prefetch=0,
            grid=(Bp // bb,),
            in_specs=[
                pl.BlockSpec((bb, H), batch2),            # ctx
                pl.BlockSpec((bb, Tp, H), batch3),        # att (dominant HBM stream, bf16)
                pl.BlockSpec((bb, Tp), batch2),           # mask
                pl.BlockSpec((H, A), const2),             # fc_ctx weight^T (resident)
                pl.BlockSpec((1, A), const2),             # fc_ctx bias
                pl.BlockSpec((H, A), const2),             # fc_att weight^T (resident)
                pl.BlockSpec((1, A), const2),             # fc_att bias
                pl.BlockSpec((1, A), const2),             # alpha_net weight (folded)
                pl.BlockSpec((H, H), const2),             # proj weight^T (resident)
                pl.BlockSpec((1, H), const2),             # proj bias
            ],
            out_specs=pl.BlockSpec((bb, H), batch2),
        ),
        compiler_params=pltpu.CompilerParams(
            dimension_semantics=("parallel",),
            vmem_limit_bytes=_vmem_limit_bytes(),
        ),
    )(ctx, att, mask, wc, bc, wa, ba, wal, wp, bp)
    return out[:B]


# ----------------------------------------------------------------------------
# Pure-JAX reference (mirrors the PyTorch module exactly, f32)
# ----------------------------------------------------------------------------
def attention_reference(ctx, att, mask, params):
    hc = jnp.tanh(ctx @ params["wc_t"] + params["bc"])
    ha = jnp.tanh(att @ params["wa_t"] + params["ba"])
    h = hc[:, None, :] * ha
    logits = jnp.sum(h * params["wal"], axis=2) + params["bal"][0, 0]
    alpha = jax.nn.softmax(logits, axis=1)
    if mask is not None:
        alpha = alpha * mask
        alpha = alpha / jnp.sum(alpha, axis=1, keepdims=True)
    ctx2 = jnp.einsum("bt,bth->bh", alpha, att)
    return jnp.tanh(ctx2 @ params["wp_t"] + params["bp"])


# ----------------------------------------------------------------------------
# Deterministic parameter init (PyTorch Linear layout, stored pre-transposed, f32)
# ----------------------------------------------------------------------------
def make_params(key, embed_size, att_hid_size):
    H, A = embed_size, att_hid_size
    ks = jax.random.split(key, 8)
    u = lambda k, shape, s: jax.random.uniform(k, shape, jnp.float32, -s, s)
    sH, sA = 1.0 / (H ** 0.5), 1.0 / (A ** 0.5)
    return {
        "wc_t": u(ks[0], (H, A), sH), "bc": u(ks[1], (1, A), sH),   # fc_ctx
        "wa_t": u(ks[2], (H, A), sH), "ba": u(ks[3], (1, A), sH),   # fc_att
        "wal":  u(ks[4], (1, A), sA), "bal": u(ks[5], (1, 1), sA),  # alpha_net
        "wp_t": u(ks[6], (H, H), sH), "bp":  u(ks[7], (1, H), sH),  # proj
    }


if __name__ == "__main__":
    key = jax.random.PRNGKey(0)
    TOL = dict(atol=2e-2, rtol=2e-2)   # kernel runs bf16 MXU operands vs. f32 reference

    # Case 1: aligned shapes — batch=8, seq=8, embed=128, att_hid=128
    B, T, E, A = 8, 8, 128, 128
    kc, ka, kp = jax.random.split(key, 3)
    params = make_params(kp, E, A)
    ctx = jax.random.normal(kc, (B, E), jnp.float32)
    att = jax.random.normal(ka, (B, T, E), jnp.float32)
    lengths = jnp.array([3, 8, 5, 6, 1, 7, 8, 4], jnp.int32)
    mask = (jnp.arange(T)[None, :] < lengths[:, None]).astype(jnp.float32)

    out = jax.block_until_ready(attention_pallas(ctx, att, mask, params))
    ref = attention_reference(ctx, att, mask, params)
    assert out.shape == (B, E)
    assert jnp.allclose(out, ref, **TOL), "masked path mismatch"

    out_nm = jax.block_until_ready(attention_pallas(ctx, att, None, params))
    ref_nm = attention_reference(ctx, att, None, params)
    assert jnp.allclose(out_nm, ref_nm, **TOL), "mask=None path mismatch"

    # Case 2: ragged shapes — exercises batch padding (13 -> 16, 2 grid steps)
    #         and T padding (9 -> 16) with a narrower att_hid
    B2, T2, E2, A2 = 13, 9, 128, 64
    k2 = jax.random.split(key, 5)
    params2 = make_params(k2[0], E2, A2)
    ctx_b = jax.random.normal(k2[1], (B2, E2), jnp.float32)
    att_b = jax.random.normal(k2[2], (B2, T2, E2), jnp.float32)
    lengths2 = jax.random.randint(k2[3], (B2,), 1, T2 + 1)
    mask2 = (jnp.arange(T2)[None, :] < lengths2[:, None]).astype(jnp.float32)

    out2 = jax.block_until_ready(attention_pallas(ctx_b, att_b, mask2, params2))
    ref2 = attention_reference(ctx_b, att_b, mask2, params2)
    assert out2.shape == (B2, E2)
    assert jnp.allclose(out2, ref2, **TOL), "padded (ragged) path mismatch"

    print("KERNEL_OK")
</pallas_src>

<mosaic_0001>
module attributes {stable_mosaic.version = 11 : i64} {
  func.func @_attention_kernel(%arg0: i32, %arg1: memref<8x128xbf16, #tpu.memory_space<vmem>>, %arg2: memref<8x16x128xbf16, #tpu.memory_space<vmem>>, %arg3: memref<8x16xf32, #tpu.memory_space<vmem>>, %arg4: memref<128x128xbf16, #tpu.memory_space<vmem>>, %arg5: memref<1x128xf32, #tpu.memory_space<vmem>>, %arg6: memref<128x128xbf16, #tpu.memory_space<vmem>>, %arg7: memref<1x128xf32, #tpu.memory_space<vmem>>, %arg8: memref<1x128xf32, #tpu.memory_space<vmem>>, %arg9: memref<128x128xbf16, #tpu.memory_space<vmem>>, %arg10: memref<1x128xf32, #tpu.memory_space<vmem>>, %arg11: memref<8x128xf32, #tpu.memory_space<vmem>>) attributes {dimension_semantics = [#tpu.dimension_semantics<parallel>], iteration_bounds = array<i64: 1>, scalar_prefetch = 0 : i64, scratch_operands = 0 : i64, tpu.core_type = #tpu.core_type<tc>, window_params = [{transform_indices = @transform_0, window_bounds = array<i64: 8, 128>}, {transform_indices = @transform_1, window_bounds = array<i64: 8, 16, 128>}, {transform_indices = @transform_2, window_bounds = array<i64: 8, 16>}, {pipeline_mode = #tpu.pipeline_mode<synchronous>, transform_indices = @transform_3, window_bounds = array<i64: 128, 128>}, {pipeline_mode = #tpu.pipeline_mode<synchronous>, transform_indices = @transform_4, window_bounds = array<i64: 1, 128>}, {pipeline_mode = #tpu.pipeline_mode<synchronous>, transform_indices = @transform_5, window_bounds = array<i64: 128, 128>}, {pipeline_mode = #tpu.pipeline_mode<synchronous>, transform_indices = @transform_6, window_bounds = array<i64: 1, 128>}, {pipeline_mode = #tpu.pipeline_mode<synchronous>, transform_indices = @transform_7, window_bounds = array<i64: 1, 128>}, {pipeline_mode = #tpu.pipeline_mode<synchronous>, transform_indices = @transform_8, window_bounds = array<i64: 128, 128>}, {pipeline_mode = #tpu.pipeline_mode<synchronous>, transform_indices = @transform_9, window_bounds = array<i64: 1, 128>}, {transform_indices = @transform_10, window_bounds = array<i64: 8, 128>}]} {
    %c0 = arith.constant 0 : index
    %c0_0 = arith.constant 0 : index
    %c0_1 = arith.constant 0 : index
    %0 = vector.load %arg2[%c0, %c0_0, %c0_1] : memref<8x16x128xbf16, #tpu.memory_space<vmem>>, vector<8x16x128xbf16>
    %1 = vector.shape_cast %0 : vector<8x16x128xbf16> to vector<128x128xbf16>
    %c0_2 = arith.constant 0 : index
    %c0_3 = arith.constant 0 : index
    %2 = vector.load %arg1[%c0_2, %c0_3] : memref<8x128xbf16, #tpu.memory_space<vmem>>, vector<8x128xbf16>
    %c0_4 = arith.constant 0 : index
    %c0_5 = arith.constant 0 : index
    %3 = vector.load %arg4[%c0_4, %c0_5] : memref<128x128xbf16, #tpu.memory_space<vmem>>, vector<128x128xbf16>
    %cst = arith.constant dense<0.000000e+00> : vector<8x128xf32>
    %4 = tpu.matmul %2, %3, %cst {dimension_numbers = #tpu.dot_dimension_numbers<[1], [0], [0], [1], [0, 0, 1, 1], [], []>} : vector<8x128xbf16>, vector<128x128xbf16>, vector<8x128xf32> -> vector<8x128xf32>
    %c0_6 = arith.constant 0 : index
    %c0_7 = arith.constant 0 : index
    %5 = vector.load %arg5[%c0_6, %c0_7] : memref<1x128xf32, #tpu.memory_space<vmem>>, vector<1x128xf32>
    %6 = vector.broadcast %5 : vector<1x128xf32> to vector<8x128xf32>
    %7 = arith.addf %4, %6 : vector<8x128xf32>
    %8 = math.tanh %7 : vector<8x128xf32>
    %c0_8 = arith.constant 0 : index
    %c0_9 = arith.constant 0 : index
    %9 = vector.load %arg6[%c0_8, %c0_9] : memref<128x128xbf16, #tpu.memory_space<vmem>>, vector<128x128xbf16>
    %cst_10 = arith.constant dense<0.000000e+00> : vector<128x128xf32>
    %10 = tpu.matmul %1, %9, %cst_10 {dimension_numbers = #tpu.dot_dimension_numbers<[1], [0], [0], [1], [0, 0, 1, 1], [], []>} : vector<128x128xbf16>, vector<128x128xbf16>, vector<128x128xf32> -> vector<128x128xf32>
    %c0_11 = arith.constant 0 : index
    %c0_12 = arith.constant 0 : index
    %11 = vector.load %arg7[%c0_11, %c0_12] : memref<1x128xf32, #tpu.memory_space<vmem>>, vector<1x128xf32>
    %12 = vector.broadcast %11 : vector<1x128xf32> to vector<128x128xf32>
    %13 = arith.addf %10, %12 : vector<128x128xf32>
    %14 = math.tanh %13 : vector<128x128xf32>
    %c0_13 = arith.constant 0 : index
    %c0_14 = arith.constant 0 : index
    %15 = vector.load %arg8[%c0_13, %c0_14] : memref<1x128xf32, #tpu.memory_space<vmem>>, vector<1x128xf32>
    %16 = vector.broadcast %15 : vector<1x128xf32> to vector<8x128xf32>
    %17 = arith.mulf %8, %16 : vector<8x128xf32>
    %18 = vector.shape_cast %17 : vector<8x128xf32> to vector<8x1x128xf32>
    %19 = vector.shape_cast %14 : vector<128x128xf32> to vector<8x16x128xf32>
    %20 = vector.broadcast %18 : vector<8x1x128xf32> to vector<8x16x128xf32>
    %21 = arith.mulf %20, %19 : vector<8x16x128xf32>
    %cst_15 = arith.constant dense<0.000000e+00> : vector<8x16xf32>
    %22 = vector.multi_reduction <add>, %21, %cst_15 [2] : vector<8x16x128xf32> to vector<8x16xf32>
    %cst_16 = arith.constant dense<0xFF800000> : vector<8xf32>
    %23 = vector.multi_reduction <maximumf>, %22, %cst_16 [1] : vector<8x16xf32> to vector<8xf32>
    %24 = vector.shape_cast %23 : vector<8xf32> to vector<8x1xf32>
    %25 = vector.broadcast %24 : vector<8x1xf32> to vector<8x16xf32>
    %26 = arith.subf %22, %25 : vector<8x16xf32>
    %27 = math.exp %26 : vector<8x16xf32>
    %c0_17 = arith.constant 0 : index
    %c0_18 = arith.constant 0 : index
    %28 = vector.load %arg3[%c0_17, %c0_18] : memref<8x16xf32, #tpu.memory_space<vmem>>, vector<8x16xf32>
    %29 = arith.mulf %27, %28 : vector<8x16xf32>
    %cst_19 = arith.constant dense<0.000000e+00> : vector<8xf32>
    %30 = vector.multi_reduction <add>, %29, %cst_19 [1] : vector<8x16xf32> to vector<8xf32>
    %31 = vector.shape_cast %30 : vector<8xf32> to vector<8x1xf32>
    %cst_20 = arith.constant 1.000000e-30 : f32
    %32 = vector.broadcast %cst_20 : f32 to vector<8x1xf32>
    %33 = arith.maximumf %31, %32 : vector<8x1xf32>
    %34 = tpu.reciprocal %33 : vector<8x1xf32> -> vector<8x1xf32>
    %35 = vector.broadcast %34 : vector<8x1xf32> to vector<8x16xf32>
    %36 = arith.mulf %29, %35 : vector<8x16xf32>
    %37 = vector.shape_cast %36 : vector<8x16xf32> to vector<8x16x1xf32>
    %38 = arith.extf %0 : vector<8x16x128xbf16> to vector<8x16x128xf32>
    %39 = vector.broadcast %37 : vector<8x16x1xf32> to vector<8x16x128xf32>
    %40 = arith.mulf %39, %38 : vector<8x16x128xf32>
    %cst_21 = arith.constant dense<0.000000e+00> : vector<8x128xf32>
    %41 = vector.multi_reduction <add>, %40, %cst_21 [1] : vector<8x16x128xf32> to vector<8x128xf32>
    %42 = arith.truncf %41 : vector<8x128xf32> to vector<8x128xbf16>
    %c0_22 = arith.constant 0 : index
    %c0_23 = arith.constant 0 : index
    %43 = vector.load %arg9[%c0_22, %c0_23] : memref<128x128xbf16, #tpu.memory_space<vmem>>, vector<128x128xbf16>
    %cst_24 = arith.constant dense<0.000000e+00> : vector<8x128xf32>
    %44 = tpu.matmul %42, %43, %cst_24 {dimension_numbers = #tpu.dot_dimension_numbers<[1], [0], [0], [1], [0, 0, 1, 1], [], []>} : vector<8x128xbf16>, vector<128x128xbf16>, vector<8x128xf32> -> vector<8x128xf32>
    %c0_25 = arith.constant 0 : index
    %c0_26 = arith.constant 0 : index
    %45 = vector.load %arg10[%c0_25, %c0_26] : memref<1x128xf32, #tpu.memory_space<vmem>>, vector<1x128xf32>
    %46 = vector.broadcast %45 : vector<1x128xf32> to vector<8x128xf32>
    %47 = arith.addf %44, %46 : vector<8x128xf32>
    %48 = math.tanh %47 : vector<8x128xf32>
    %c0_27 = arith.constant 0 : index
    %c0_28 = arith.constant 0 : index
    %49 = vector.load %arg11[%c0_27, %c0_28] : memref<8x128xf32, #tpu.memory_space<vmem>>, vector<8x128xf32>
    tpu.vector_store %arg11[%c0_27, %c0_28], %48 {strides = array<i32>} : memref<8x128xf32, #tpu.memory_space<vmem>>, vector<8x128xf32>,
    return
  }
  func.func @transform_0(%arg0: i32) -> (i32, i32) {
    %c0_i32 = arith.constant 0 : i32
    %c0_i32_0 = arith.constant 0 : i32
    return %arg0, %c0_i32 : i32, i32
  }
  func.func @transform_1(%arg0: i32) -> (i32, i32, i32) {
    %c0_i32 = arith.constant 0 : i32
    %c0_i32_0 = arith.constant 0 : i32
    %c0_i32_1 = arith.constant 0 : i32
    return %arg0, %c0_i32, %c0_i32_0 : i32, i32, i32
  }
  func.func @transform_2(%arg0: i32) -> (i32, i32) {
    %c0_i32 = arith.constant 0 : i32
    %c0_i32_0 = arith.constant 0 : i32
    return %arg0, %c0_i32 : i32, i32
  }
  func.func @transform_3(%arg0: i32) -> (i32, i32) {
    %c0_i32 = arith.constant 0 : i32
    %c0_i32_0 = arith.constant 0 : i32
    %c0_i32_1 = arith.constant 0 : i32
    return %c0_i32, %c0_i32_0 : i32, i32
  }
  func.func @transform_4(%arg0: i32) -> (i32, i32) {
    %c0_i32 = arith.constant 0 : i32
    %c0_i32_0 = arith.constant 0 : i32
    %c0_i32_1 = arith.constant 0 : i32
    return %c0_i32, %c0_i32_0 : i32, i32
  }
  func.func @transform_5(%arg0: i32) -> (i32, i32) {
    %c0_i32 = arith.constant 0 : i32
    %c0_i32_0 = arith.constant 0 : i32
    %c0_i32_1 = arith.constant 0 : i32
    return %c0_i32, %c0_i32_0 : i32, i32
  }
  func.func @transform_6(%arg0: i32) -> (i32, i32) {
    %c0_i32 = arith.constant 0 : i32
    %c0_i32_0 = arith.constant 0 : i32
    %c0_i32_1 = arith.constant 0 : i32
    return %c0_i32, %c0_i32_0 : i32, i32
  }
  func.func @transform_7(%arg0: i32) -> (i32, i32) {
    %c0_i32 = arith.constant 0 : i32
    %c0_i32_0 = arith.constant 0 : i32
    %c0_i32_1 = arith.constant 0 : i32
    return %c0_i32, %c0_i32_0 : i32, i32
  }
  func.func @transform_8(%arg0: i32) -> (i32, i32) {
    %c0_i32 = arith.constant 0 : i32
    %c0_i32_0 = arith.constant 0 : i32
    %c0_i32_1 = arith.constant 0 : i32
    return %c0_i32, %c0_i32_0 : i32, i32
  }
  func.func @transform_9(%arg0: i32) -> (i32, i32) {
    %c0_i32 = arith.constant 0 : i32
    %c0_i32_0 = arith.constant 0 : i32
    %c0_i32_1 = arith.constant 0 : i32
    return %c0_i32, %c0_i32_0 : i32, i32
  }
  func.func @transform_10(%arg0: i32) -> (i32, i32) {
    %c0_i32 = arith.constant 0 : i32
    %c0_i32_0 = arith.constant 0 : i32
    return %arg0, %c0_i32 : i32, i32
  }
}

</mosaic_0001>

<llo_original>
// kernel: tpu_custom_call.1
$region0: #{tpu_custom_call.1}
  #allocation0 [shape = 'u32[]', space=smem, size = 0x4, offset = 0x4, fixed_abs, tag = 'smem constant byte address 0x4 - core index']
  #allocation1 [shape = 'u32[144,128]{1,0:T(1,128)}', space=vmem, size = 0x12000, scoped, tag = 'internal scratch']
  %s0 = inlined_call_operand.hbm [shape: bf16[8,128], index: 0, kind: input, shape index: {}]
  %s1 = inlined_call_operand.hbm [shape: bf16[8,16,128], index: 1, kind: input, shape index: {}]
  %s2 = inlined_call_operand.hbm [shape: f32[8,16], index: 2, kind: input, shape index: {}]
  %s3 = inlined_call_operand.hbm [shape: bf16[128,128], index: 3, kind: input, shape index: {}]
  %s4 = inlined_call_operand.vmem [shape: f32[1,128], index: 4, kind: input, shape index: {}]
  %s5 = inlined_call_operand.hbm [shape: bf16[128,128], index: 5, kind: input, shape index: {}]
  %s6 = inlined_call_operand.vmem [shape: f32[1,128], index: 6, kind: input, shape index: {}]
  %s7 = inlined_call_operand.vmem [shape: f32[1,128], index: 7, kind: input, shape index: {}]
  %s8 = inlined_call_operand.hbm [shape: bf16[128,128], index: 8, kind: input, shape index: {}]
  %s9 = inlined_call_operand.vmem [shape: f32[1,128], index: 9, kind: input, shape index: {}]
  %s10 = inlined_call_operand.hbm [shape: f32[8,128], index: 10, kind: output, shape index: {}]
  %s11 = sld [smem:[#allocation0]]
  $region74: #{tpu_custom_call.1} parent=0
    _
  %s13 = ssub.s32 1, %s11
  %s14 = scalar_select 0, %s13, %s11
  $region1: #{tpu_custom_call.1} parent=0
    #allocation2 [shape = 'u8[2048]{0}', space=vmem, size = 0x800, scoped, tag = 'input window, operand 0, single buffered']
    #allocation3 [shape = 's32[1]{0}', space=sflag, size = 0x4, scoped, tag = 'scoped memory for tpu_custom_call.1']
    #allocation4 [shape = 's32[1]{0}', space=sflag, size = 0x4, scoped, tag = 'scoped memory for tpu_custom_call.1']
    #allocation5 [shape = 'u8[32768]{0}', space=vmem, size = 0x8000, scoped, tag = 'input window, operand 1, single buffered']
    #allocation6 [shape = 's32[1]{0}', space=sflag, size = 0x4, scoped, tag = 'scoped memory for tpu_custom_call.1']
    #allocation7 [shape = 'u8[4096]{0}', space=vmem, size = 0x1000, scoped, tag = 'input window, operand 2, single buffered']
    #allocation8 [shape = 'u8[32768]{0}', space=vmem, size = 0x8000, scoped, tag = 'input window, operand 3, single buffered']
    #allocation9 [shape = 's32[1]{0}', space=sflag, size = 0x4, scoped, tag = 'scoped memory for tpu_custom_call.1']
    #allocation10 [shape = 'u8[32768]{0}', space=vmem, size = 0x8000, scoped, tag = 'input window, operand 5, single buffered']
    #allocation11 [shape = 'u8[32768]{0}', space=vmem, size = 0x8000, scoped, tag = 'input window, operand 8, single buffered']
    #allocation12 [shape = 's32[1]{0}', space=sflag, size = 0x4, scoped, tag = 'scoped memory for tpu_custom_call.1']
    #allocation13 [shape = 'u8[4096]{0}', space=vmem, size = 0x1000, scoped, tag = 'output window, operand 0, single buffered']
    %15 = vsyncpa [#allocation3], 0
    %16 = vsyncpa [#allocation6], 0
    %17 = vsyncpa [#allocation9], 0
    %18 = vsyncpa [#allocation12], 0
    %19 = vsyncpa [#allocation4], 0
    // Predicated region
    $region2: #{tpu_custom_call.1} parent=1 // pred_check
      _
    $region3: #{tpu_custom_call.1} parent=1 // pred_check_branch
      %21 = sbr.rel (0) target = $region5
    $region4: #{tpu_custom_call.1} parent=1 // pred_region
      %s23 = ssub.s32 64, 64
      %24 = vsyncadd [#allocation3], %s23
      %s26 = sshll.u32 [#allocation2], 4
      %s27 = int_to_ptr.vmem [resolvable:$true] %s26
      %29 = dma.hbm_to_vmem [thread:$0]  %s0, 64, %s27, [#allocation3]
    $region5: #{tpu_custom_call.1} parent=1 // pred_fallthru
      _
    // Predicated region
    $region6: #{tpu_custom_call.1} parent=1 // pred_check
      _
    $region7: #{tpu_custom_call.1} parent=1 // pred_check_branch
      %31 = sbr.rel (0) target = $region9
    $region8: #{tpu_custom_call.1} parent=1 // pred_region
      %s33 = ssub.s32 1024, 1024
      %34 = vsyncadd [#allocation6], %s33
      %s35 = sshll.u32 [#allocation5], 4
      %s36 = int_to_ptr.vmem [resolvable:$true] %s35
      %41 = dma.hbm_to_vmem [thread:$0]  %s1, 1024, %s36, [#allocation6], 64, 64, 4
    $region9: #{tpu_custom_call.1} parent=1 // pred_fallthru
      _
    // Predicated region
    $region10: #{tpu_custom_call.1} parent=1 // pred_check
      _
    $region11: #{tpu_custom_call.1} parent=1 // pred_check_branch
      %43 = sbr.rel (0) target = $region13
    $region12: #{tpu_custom_call.1} parent=1 // pred_region
      %s45 = ssub.s32 128, 128
      %46 = vsyncadd [#allocation6], %s45
      %s48 = sshll.u32 [#allocation7], 4
      %s49 = int_to_ptr.vmem [resolvable:$true] %s48
      %51 = dma.hbm_to_vmem [thread:$0]  %s2, 128, %s49, [#allocation6]
    $region13: #{tpu_custom_call.1} parent=1 // pred_fallthru
      _
    // Predicated region
    $region14: #{tpu_custom_call.1} parent=1 // pred_check
      _
    $region15: #{tpu_custom_call.1} parent=1 // pred_check_branch
      %53 = sbr.rel (0) target = $region17
    $region16: #{tpu_custom_call.1} parent=1 // pred_region
      %s55 = ssub.s32 1024, 1024
      %56 = vsyncadd [#allocation9], %s55
      %s57 = sshll.u32 [#allocation8], 4
      %s58 = int_to_ptr.vmem [resolvable:$true] %s57
      %63 = dma.hbm_to_vmem [thread:$0]  %s3, 1024, %s58, [#allocation9], 64, 64, 4
    $region17: #{tpu_custom_call.1} parent=1 // pred_fallthru
      _
    // Predicated region
    $region18: #{tpu_custom_call.1} parent=1 // pred_check
      _
    $region19: #{tpu_custom_call.1} parent=1 // pred_check_branch
      %65 = sbr.rel (0) target = $region21
    $region20: #{tpu_custom_call.1} parent=1 // pred_region
      _
    $region21: #{tpu_custom_call.1} parent=1 // pred_fallthru
      _
    // Predicated region
    $region22: #{tpu_custom_call.1} parent=1 // pred_check
      _
    $region23: #{tpu_custom_call.1} parent=1 // pred_check_branch
      %67 = sbr.rel (0) target = $region25
    $region24: #{tpu_custom_call.1} parent=1 // pred_region
      %s69 = ssub.s32 1024, 1024
      %70 = vsyncadd [#allocation9], %s69
      %s71 = sshll.u32 [#allocation10], 4
      %s72 = int_to_ptr.vmem [resolvable:$true] %s71
      %77 = dma.hbm_to_vmem [thread:$0]  %s5, 1024, %s72, [#allocation9], 64, 64, 4
    $region25: #{tpu_custom_call.1} parent=1 // pred_fallthru
      _
    // Predicated region
    $region26: #{tpu_custom_call.1} parent=1 // pred_check
      _
    $region27: #{tpu_custom_call.1} parent=1 // pred_check_branch
      %79 = sbr.rel (0) target = $region29
    $region28: #{tpu_custom_call.1} parent=1 // pred_region
      _
    $region29: #{tpu_custom_call.1} parent=1 // pred_fallthru
      _
    // Predicated region
    $region30: #{tpu_custom_call.1} parent=1 // pred_check
      _
    $region31: #{tpu_custom_call.1} parent=1 // pred_check_branch
      %81 = sbr.rel (0) target = $region33
    $region32: #{tpu_custom_call.1} parent=1 // pred_region
      _
    $region33: #{tpu_custom_call.1} parent=1 // pred_fallthru
      _
    // Predicated region
    $region34: #{tpu_custom_call.1} parent=1 // pred_check
      _
    $region35: #{tpu_custom_call.1} parent=1 // pred_check_branch
      %83 = sbr.rel (0) target = $region37
    $region36: #{tpu_custom_call.1} parent=1 // pred_region
      %s85 = ssub.s32 1024, 1024
      %86 = vsyncadd [#allocation12], %s85
      %s87 = sshll.u32 [#allocation11], 4
      %s88 = int_to_ptr.vmem [resolvable:$true] %s87
      %93 = dma.hbm_to_vmem [thread:$0]  %s8, 1024, %s88, [#allocation12], 64, 64, 4
    $region37: #{tpu_custom_call.1} parent=1 // pred_fallthru
      _
    // Predicated region
    $region38: #{tpu_custom_call.1} parent=1 // pred_check
      _
    $region39: #{tpu_custom_call.1} parent=1 // pred_check_branch
      %95 = sbr.rel (0) target = $region41
    $region40: #{tpu_custom_call.1} parent=1 // pred_region
      _
    $region41: #{tpu_custom_call.1} parent=1 // pred_fallthru
      _
    // Predicated region
    $region42: #{tpu_custom_call.1} parent=1 // pred_check
      _
    $region43: #{tpu_custom_call.1} parent=1 // pred_check_branch
      %97 = sbr.rel (0) target = $region45
    $region44: #{tpu_custom_call.1} parent=1 // pred_region
      %98 = dma.done [#allocation3], 64
    $region45: #{tpu_custom_call.1} parent=1 // pred_fallthru
      _
    // Predicated region
    $region46: #{tpu_custom_call.1} parent=1 // pred_check
      _
    $region47: #{tpu_custom_call.1} parent=1 // pred_check_branch
      %100 = sbr.rel (0) target = $region49
    $region48: #{tpu_custom_call.1} parent=1 // pred_region
      %101 = dma.done [#allocation6], 1024
    $region49: #{tpu_custom_call.1} parent=1 // pred_fallthru
      _
    // Predicated region
    $region50: #{tpu_custom_call.1} parent=1 // pred_check
      _
    $region51: #{tpu_custom_call.1} parent=1 // pred_check_branch
      %103 = sbr.rel (0) target = $region53
    $region52: #{tpu_custom_call.1} parent=1 // pred_region
      %104 = dma.done [#allocation6], 128
    $region53: #{tpu_custom_call.1} parent=1 // pred_fallthru
      _
    // Predicated region
    $region54: #{tpu_custom_call.1} parent=1 // pred_check
      _
    $region55: #{tpu_custom_call.1} parent=1 // pred_check_branch
      %106 = sbr.rel (0) target = $region57
    $region56: #{tpu_custom_call.1} parent=1 // pred_region
      %107 = dma.done [#allocation9], 1024
    $region57: #{tpu_custom_call.1} parent=1 // pred_fallthru
      _
    // Predicated region
    $region58: #{tpu_custom_call.1} parent=1 // pred_check
      _
    $region59: #{tpu_custom_call.1} parent=1 // pred_check_branch
      %109 = sbr.rel (0) target = $region61
    $region60: #{tpu_custom_call.1} parent=1 // pred_region
      %110 = dma.done [#allocation9], 1024
    $region61: #{tpu_custom_call.1} parent=1 // pred_fallthru
      _
    // Predicated region
    $region62: #{tpu_custom_call.1} parent=1 // pred_check
      _
    $region63: #{tpu_custom_call.1} parent=1 // pred_check_branch
      %112 = sbr.rel (0) target = $region65
    $region64: #{tpu_custom_call.1} parent=1 // pred_region
      %113 = dma.done [#allocation12], 1024
    $region65: #{tpu_custom_call.1} parent=1 // pred_fallthru
      _
    %v115 = vld [vmem:[#allocation5] sm:$0xf]
    %v116 = vld [vmem:[#allocation5 + $0x4] sm:$0xf]
    %v117 = vld [vmem:[#allocation5 + $0x8] sm:$0xf]
    %v118 = vld [vmem:[#allocation5 + $0xc] sm:$0xf]
    %v119 = vld [vmem:[#allocation5 + $0x10] sm:$0xf]
    %v120 = vld [vmem:[#allocation5 + $0x14] sm:$0xf]
    %v121 = vld [vmem:[#allocation5 + $0x18] sm:$0xf]
    %v122 = vld [vmem:[#allocation5 + $0x1c] sm:$0xf]
    %v123 = vld [vmem:[#allocation5 + $0x20] sm:$0xf]
    %v124 = vld [vmem:[#allocation5 + $0x24] sm:$0xf]
    %v125 = vld [vmem:[#allocation5 + $0x28] sm:$0xf]
    %v126 = vld [vmem:[#allocation5 + $0x2c] sm:$0xf]
    %v127 = vld [vmem:[#allocation5 + $0x30] sm:$0xf]
    %v128 = vld [vmem:[#allocation5 + $0x34] sm:$0xf]
    %v129 = vld [vmem:[#allocation5 + $0x38] sm:$0xf]
    %v130 = vld [vmem:[#allocation5 + $0x3c] sm:$0xf]
    %v131 = vld [vmem:[#allocation2] sm:$0xf]
    %v132 = vld [vmem:[#allocation8] sm:$0xf]
    %v133 = vld [vmem:[#allocation8 + $0x4] sm:$0xf]
    %v134 = vld [vmem:[#allocation8 + $0x8] sm:$0xf]
    %v135 = vld [vmem:[#allocation8 + $0xc] sm:$0xf]
    %v136 = vld [vmem:[#allocation8 + $0x10] sm:$0xf]
    %v137 = vld [vmem:[#allocation8 + $0x14] sm:$0xf]
    %v138 = vld [vmem:[#allocation8 + $0x18] sm:$0xf]
    %v139 = vld [vmem:[#allocation8 + $0x1c] sm:$0xf]
    %v140 = vld [vmem:[#allocation8 + $0x20] sm:$0xf]
    %v141 = vld [vmem:[#allocation8 + $0x24] sm:$0xf]
    %v142 = vld [vmem:[#allocation8 + $0x28] sm:$0xf]
    %v143 = vld [vmem:[#allocation8 + $0x2c] sm:$0xf]
    %v144 = vld [vmem:[#allocation8 + $0x30] sm:$0xf]
    %v145 = vld [vmem:[#allocation8 + $0x34] sm:$0xf]
    %v146 = vld [vmem:[#allocation8 + $0x38] sm:$0xf]
    %v147 = vld [vmem:[#allocation8 + $0x3c] sm:$0xf]
    %v148 = vld [vmem:[%s4] sm:$0x1]
    %v150 = vlaneseq
    %v151 = vshrl.u32 %v150, 7
    %v152 = vsub.s32 0, %v151
    %v153 = vrot.slane %v148, %v152
    %v171 = vunpack.c.l.b16 %v132
    %v172 = vunpack.c.l.b16 %v133
    %v173 = vunpack.c.l.b16 %v134
    %v174 = vunpack.c.l.b16 %v135
    %v175 = vunpack.c.l.b16 %v136
    %v176 = vunpack.c.l.b16 %v137
    %v177 = vunpack.c.l.b16 %v138
    %v178 = vunpack.c.l.b16 %v139
    %v179 = vunpack.c.l.b16 %v140
    %v180 = vunpack.c.l.b16 %v141
    %v181 = vunpack.c.l.b16 %v142
    %v182 = vunpack.c.l.b16 %v143
    %v183 = vunpack.c.l.b16 %v144
    %v184 = vunpack.c.l.b16 %v145
    %v185 = vunpack.c.l.b16 %v146
    %v186 = vunpack.c.l.b16 %v147
    %v187 = vpack.c.b16 %v172, %v171
    %v188 = vpack.c.b16 %v174, %v173
    %v189 = vpack.c.b16 %v176, %v175
    %v190 = vpack.c.b16 %v178, %v177
    %v191 = vpack.c.b16 %v180, %v179
    %v192 = vpack.c.b16 %v182, %v181
    %v193 = vpack.c.b16 %v184, %v183
    %v194 = vpack.c.b16 %v186, %v185
    %203 = vmatprep.subr.bf16.mxu0 0
    %204 = vmatpush1.bf16.msra.mxu0 %v187
    %205 = vmatprep.subr.bf16.mxu0 0
    %206 = vmatpush1.bf16.msra.mxu0 %v188
    %207 = vmatprep.subr.bf16.mxu0 0
    %208 = vmatpush1.bf16.msra.mxu0 %v189
    %209 = vmatprep.subr.bf16.mxu0 0
    %210 = vmatpush1.bf16.msra.mxu0 %v190
    %211 = vmatprep.subr.bf16.mxu0 0
    %212 = vmatpush1.bf16.msra.mxu0 %v191
    %213 = vmatprep.subr.bf16.mxu0 0
    %214 = vmatpush1.bf16.msra.mxu0 %v192
    %215 = vmatprep.subr.bf16.mxu0 0
    %216 = vmatpush1.bf16.msra.mxu0 %v193
    %217 = vmatprep.subr.bf16.mxu0 0
    %218 = vmatpush1.bf16.msra.mxu0 %v194
    %219 = vmatprep.subr.bf16.mxu0 0
    %220 = vmatpush1.bf16.msra.mxu0 0
    %221 = vmatprep.subr.bf16.mxu0 0
    %222 = vmatpush1.bf16.msra.mxu0 0
    %223 = vmatprep.subr.bf16.mxu0 0
    %224 = vmatpush1.bf16.msra.mxu0 0
    %225 = vmatprep.subr.bf16.mxu0 0
    %226 = vmatpush1.bf16.msra.mxu0 0
    %227 = vmatprep.subr.bf16.mxu0 0
    %228 = vmatpush1.bf16.msra.mxu0 0
    %229 = vmatprep.subr.bf16.mxu0 0
    %230 = vmatpush1.bf16.msra.mxu0 0
    %231 = vmatprep.subr.bf16.mxu0 0
    %232 = vmatpush1.bf16.msra.mxu0 0
    %233 = vmatprep.subr.bf16.mxu0 0
    %234 = vmatpush1.bf16.msra.mxu0 0
    %235 = vmatprep.mubr.bf16.mxu0 0
    %236 = vmatmul.mubr.bf16.gmra.mrb[0].mxu0 %v131
    %v237 = vpop.f32.mrb[0].mxu0
    %v238 = vadd.f32 %v153, %v237
    %v239 = vpop.f32.mrb[0].mxu0
    %v240 = vpop.f32.mrb[0].mxu0
    %v241 = vpop.f32.mrb[0].mxu0
    %242 = vdwg.mxu0
    %v243 = vtanh.pop %v238
    %v244 = vld [vmem:[#allocation10] sm:$0xf]
    %v245 = vld [vmem:[#allocation10 + $0x4] sm:$0xf]
    %v246 = vld [vmem:[#allocation10 + $0x8] sm:$0xf]
    %v247 = vld [vmem:[#allocation10 + $0xc] sm:$0xf]
    %v248 = vld [vmem:[#allocation10 + $0x10] sm:$0xf]
    %v249 = vld [vmem:[#allocation10 + $0x14] sm:$0xf]
    %v250 = vld [vmem:[#allocation10 + $0x18] sm:$0xf]
    %v251 = vld [vmem:[#allocation10 + $0x1c] sm:$0xf]
    %v252 = vld [vmem:[#allocation10 + $0x20] sm:$0xf]
    %v253 = vld [vmem:[#allocation10 + $0x24] sm:$0xf]
    %v254 = vld [vmem:[#allocation10 + $0x28] sm:$0xf]
    %v255 = vld [vmem:[#allocation10 + $0x2c] sm:$0xf]
    %v256 = vld [vmem:[#allocation10 + $0x30] sm:$0xf]
    %v257 = vld [vmem:[#allocation10 + $0x34] sm:$0xf]
    %v258 = vld [vmem:[#allocation10 + $0x38] sm:$0xf]
    %v259 = vld [vmem:[#allocation10 + $0x3c] sm:$0xf]
    %v260 = vld [vmem:[%s6] sm:$0x1]
    %v262 = vlaneseq
    %v263 = vshrl.u32 %v262, 7
    %v264 = vsub.s32 0, %v263
    %v265 = vrot.slane %v260, %v264
    %v283 = vunpack.c.l.b16 %v115
    %v284 = vunpack.c.l.b16 %v116
    %v285 = vunpack.c.l.b16 %v117
    %v286 = vunpack.c.l.b16 %v118
    %v287 = vunpack.c.l.b16 %v119
    %v288 = vunpack.c.l.b16 %v120
    %v289 = vunpack.c.l.b16 %v121
    %v290 = vunpack.c.l.b16 %v122
    %v291 = vunpack.c.l.b16 %v123
    %v292 = vunpack.c.l.b16 %v124
    %v293 = vunpack.c.l.b16 %v125
    %v294 = vunpack.c.l.b16 %v126
    %v295 = vunpack.c.l.b16 %v127
    %v296 = vunpack.c.l.b16 %v128
    %v297 = vunpack.c.l.b16 %v129
    %v298 = vunpack.c.l.b16 %v130
    %v299 = vpack.c.b16 %v284, %v283
    %v300 = vpack.c.b16 %v286, %v285
    %v301 = vpack.c.b16 %v288, %v287
    %v302 = vpack.c.b16 %v290, %v289
    %v303 = vpack.c.b16 %v292, %v291
    %v304 = vpack.c.b16 %v294, %v293
    %v305 = vpack.c.b16 %v296, %v295
    %v306 = vpack.c.b16 %v298, %v297
    %v331 = vunpack.c.l.b16 %v244
    %v332 = vunpack.c.l.b16 %v245
    %v333 = vunpack.c.l.b16 %v246
    %v334 = vunpack.c.l.b16 %v247
    %v335 = vunpack.c.l.b16 %v248
    %v336 = vunpack.c.l.b16 %v249
    %v337 = vunpack.c.l.b16 %v250
    %v338 = vunpack.c.l.b16 %v251
    %v339 = vunpack.c.l.b16 %v252
    %v340 = vunpack.c.l.b16 %v253
    %v341 = vunpack.c.l.b16 %v254
    %v342 = vunpack.c.l.b16 %v255
    %v343 = vunpack.c.l.b16 %v256
    %v344 = vunpack.c.l.b16 %v257
    %v345 = vunpack.c.l.b16 %v258
    %v346 = vunpack.c.l.b16 %v259
    %v347 = vpack.c.b16 %v332, %v331
    %v348 = vpack.c.b16 %v334, %v333
    %v349 = vpack.c.b16 %v336, %v335
    %v350 = vpack.c.b16 %v338, %v337
    %v351 = vpack.c.b16 %v340, %v339
    %v352 = vpack.c.b16 %v342, %v341
    %v353 = vpack.c.b16 %v344, %v343
    %v354 = vpack.c.b16 %v346, %v345
    %363 = vmatprep.subr.bf16.mxu0 0
    %364 = vmatpush1.bf16.msra.mxu0 %v347
    %365 = vmatprep.subr.bf16.mxu0 0
    %366 = vmatpush1.bf16.msra.mxu0 %v348
    %367 = vmatprep.subr.bf16.mxu0 0
    %368 = vmatpush1.bf16.msra.mxu0 %v349
    %369 = vmatprep.subr.bf16.mxu0 0
    %370 = vmatpush1.bf16.msra.mxu0 %v350
    %371 = vmatprep.subr.bf16.mxu0 0
    %372 = vmatpush1.bf16.msra.mxu0 %v351
    %373 = vmatprep.subr.bf16.mxu0 0
    %374 = vmatpush1.bf16.msra.mxu0 %v352
    %375 = vmatprep.subr.bf16.mxu0 0
    %376 = vmatpush1.bf16.msra.mxu0 %v353
    %377 = vmatprep.subr.bf16.mxu0 0
    %378 = vmatpush1.bf16.msra.mxu0 %v354
    %379 = vmatprep.subr.bf16.mxu0 0
    %380 = vmatpush1.bf16.msra.mxu0 0
    %381 = vmatprep.subr.bf16.mxu0 0
    %382 = vmatpush1.bf16.msra.mxu0 0
    %383 = vmatprep.subr.bf16.mxu0 0
    %384 = vmatpush1.bf16.msra.mxu0 0
    %385 = vmatprep.subr.bf16.mxu0 0
    %386 = vmatpush1.bf16.msra.mxu0 0
    %387 = vmatprep.subr.bf16.mxu0 0
    %388 = vmatpush1.bf16.msra.mxu0 0
    %389 = vmatprep.subr.bf16.mxu0 0
    %390 = vmatpush1.bf16.msra.mxu0 0
    %391 = vmatprep.subr.bf16.mxu0 0
    %392 = vmatpush1.bf16.msra.mxu0 0
    %393 = vmatprep.subr.bf16.mxu0 0
    %394 = vmatpush1.bf16.msra.mxu0 0
    %395 = vmatprep.mubr.bf16.mxu0 0
    %396 = vmatmul.mubr.bf16.gmra.mrb[0].mxu0 %v299
    %v397 = vpop.f32.mrb[0].mxu0
    %v398 = vadd.f32 %v265, %v397
    %v399 = vpop.f32.mrb[0].mxu0
    %v400 = vpop.f32.mrb[0].mxu0
    %v401 = vadd.f32 %v265, %v400
    %v402 = vpop.f32.mrb[0].mxu0
    %403 = vmatprep.mubr.bf16.mxu0 0
    %404 = vmatmul.mubr.bf16.gmra.mrb[0].mxu0 %v300
    %v405 = vpop.f32.mrb[0].mxu0
    %v406 = vadd.f32 %v265, %v405
    %v407 = vpop.f32.mrb[0].mxu0
    %v408 = vpop.f32.mrb[0].mxu0
    %v409 = vadd.f32 %v265, %v408
    %v410 = vpop.f32.mrb[0].mxu0
    %411 = vmatprep.mubr.bf16.mxu0 0
    %412 = vmatmul.mubr.bf16.gmra.mrb[0].mxu0 %v301
    %v413 = vpop.f32.mrb[0].mxu0
    %v414 = vadd.f32 %v265, %v413
    %v415 = vpop.f32.mrb[0].mxu0
    %v416 = vpop.f32.mrb[0].mxu0
    %v417 = vadd.f32 %v265, %v416
    %v418 = vpop.f32.mrb[0].mxu0
    %419 = vmatprep.mubr.bf16.mxu0 0
    %420 = vmatmul.mubr.bf16.gmra.mrb[0].mxu0 %v302
    %v421 = vpop.f32.mrb[0].mxu0
    %v422 = vadd.f32 %v265, %v421
    %v423 = vpop.f32.mrb[0].mxu0
    %v424 = vpop.f32.mrb[0].mxu0
    %v425 = vadd.f32 %v265, %v424
    %v426 = vpop.f32.mrb[0].mxu0
    %427 = vmatprep.mubr.bf16.mxu0 0
    %428 = vmatmul.mubr.bf16.gmra.mrb[0].mxu0 %v303
    %v429 = vpop.f32.mrb[0].mxu0
    %v430 = vadd.f32 %v265, %v429
    %v431 = vpop.f32.mrb[0].mxu0
    %v432 = vpop.f32.mrb[0].mxu0
    %v433 = vadd.f32 %v265, %v432
    %v434 = vpop.f32.mrb[0].mxu0
    %435 = vmatprep.mubr.bf16.mxu0 0
    %436 = vmatmul.mubr.bf16.gmra.mrb[0].mxu0 %v304
    %v437 = vpop.f32.mrb[0].mxu0
    %v438 = vadd.f32 %v265, %v437
    %v439 = vpop.f32.mrb[0].mxu0
    %v440 = vpop.f32.mrb[0].mxu0
    %v441 = vadd.f32 %v265, %v440
    %v442 = vpop.f32.mrb[0].mxu0
    %443 = vmatprep.mubr.bf16.mxu0 0
    %444 = vmatmul.mubr.bf16.gmra.mrb[0].mxu0 %v305
    %v445 = vpop.f32.mrb[0].mxu0
    %v446 = vadd.f32 %v265, %v445
    %v447 = vpop.f32.mrb[0].mxu0
    %v448 = vpop.f32.mrb[0].mxu0
    %v449 = vadd.f32 %v265, %v448
    %v450 = vpop.f32.mrb[0].mxu0
    %451 = vmatprep.mubr.bf16.mxu0 0
    %452 = vmatmul.mubr.bf16.gmra.mrb[0].mxu0 %v306
    %v453 = vpop.f32.mrb[0].mxu0
    %v454 = vadd.f32 %v265, %v453
    %v455 = vpop.f32.mrb[0].mxu0
    %v456 = vpop.f32.mrb[0].mxu0
    %v457 = vadd.f32 %v265, %v456
    %v458 = vpop.f32.mrb[0].mxu0
    %459 = vdwg.mxu0
    %v460 = vtanh.pop %v398
    %v461 = vtanh.pop %v401
    %v462 = vtanh.pop %v406
    %v463 = vtanh.pop %v409
    %v464 = vtanh.pop %v414
    %v465 = vtanh.pop %v417
    %v466 = vtanh.pop %v422
    %v467 = vtanh.pop %v425
    %v468 = vtanh.pop %v430
    %v469 = vtanh.pop %v433
    %v470 = vtanh.pop %v438
    %v471 = vtanh.pop %v441
    %v472 = vtanh.pop %v446
    %v473 = vtanh.pop %v449
    %v474 = vtanh.pop %v454
    %v475 = vtanh.pop %v457
    %v476 = vld [vmem:[%s7] sm:$0x1]
    %v478 = vlaneseq
    %v479 = vshrl.u32 %v478, 7
    %v480 = vsub.s32 0, %v479
    %v481 = vrot.slane %v476, %v480
    %v483 = vmul.f32 %v243, %v481
    %v485 = vcombine.high %v483, %v483
    %v487 = vunpack.c.l.s4 1966171168
    %v488 = vunpack.c.0.s8 %v487
    %v489 = vlaneseq
    %v490 = vshrl.u32 %v489, 7
    %v491 = vsub.s32 %v488, %v490
    %v492 = vrot.slane %v483, %v491
    %v494 = vunpack.c.l.s4 1966171168
    %v495 = vunpack.c.0.s8 %v494
    %v496 = vlaneseq
    %v497 = vshrl.u32 %v496, 7
    %v498 = vsub.s32 %v495, %v497
    %v499 = vrot.slane %v485, %v498
    %v500 = vcombine.high %v492, %v492
    %v501 = vcombine.high %v499, %v499
    %v503 = vunpack.c.l.s4 1966171168
    %v504 = vunpack.c.0.s8 %v503
    %v505 = vlaneseq
    %v506 = vshrl.u32 %v505, 7
    %v507 = vsub.s32 %v504, %v506
    %v508 = vrot.slane %v492, %v507
    %v510 = vunpack.c.l.s4 1966171168
    %v511 = vunpack.c.0.s8 %v510
    %v512 = vlaneseq
    %v513 = vshrl.u32 %v512, 7
    %v514 = vsub.s32 %v511, %v513
    %v515 = vrot.slane %v499, %v514
    %v517 = vunpack.c.l.s4 1966171168
    %v518 = vunpack.c.0.s8 %v517
    %v519 = vlaneseq
    %v520 = vshrl.u32 %v519, 7
    %v521 = vsub.s32 %v518, %v520
    %v522 = vrot.slane %v500, %v521
    %v524 = vunpack.c.l.s4 1966171168
    %v525 = vunpack.c.0.s8 %v524
    %v526 = vlaneseq
    %v527 = vshrl.u32 %v526, 7
    %v528 = vsub.s32 %v525, %v527
    %v529 = vrot.slane %v501, %v528
    %v530 = vcombine.high %v508, %v508
    %v531 = vcombine.high %v515, %v515
    %v532 = vcombine.high %v522, %v522
    %v533 = vcombine.high %v529, %v529
    %v534 = vlaneseq
    %v535 = vshrl.u32 %v534, 7
    %v536 = vsub.s32 0, %v535
    %v537 = vrot.slane %v508, %v536
    %v538 = vlaneseq
    %v539 = vshrl.u32 %v538, 7
    %v540 = vsub.s32 0, %v539
    %v541 = vrot.slane %v522, %v540
    %v542 = vlaneseq
    %v543 = vshrl.u32 %v542, 7
    %v544 = vsub.s32 0, %v543
    %v545 = vrot.slane %v530, %v544
    %v546 = vlaneseq
    %v547 = vshrl.u32 %v546, 7
    %v548 = vsub.s32 0, %v547
    %v549 = vrot.slane %v532, %v548
    %v550 = vlaneseq
    %v551 = vshrl.u32 %v550, 7
    %v552 = vsub.s32 0, %v551
    %v553 = vrot.slane %v515, %v552
    %v554 = vlaneseq
    %v555 = vshrl.u32 %v554, 7
    %v556 = vsub.s32 0, %v555
    %v557 = vrot.slane %v529, %v556
    %v558 = vlaneseq
    %v559 = vshrl.u32 %v558, 7
    %v560 = vsub.s32 0, %v559
    %v561 = vrot.slane %v531, %v560
    %v562 = vlaneseq
    %v563 = vshrl.u32 %v562, 7
    %v564 = vsub.s32 0, %v563
    %v565 = vrot.slane %v533, %v564
    %v574 = vmul.f32 %v537, %v460
    %v575 = vmul.f32 %v537, %v461
    %v576 = vmul.f32 %v541, %v462
    %v577 = vmul.f32 %v541, %v463
    %v578 = vmul.f32 %v545, %v464
    %v579 = vmul.f32 %v545, %v465
    %v580 = vmul.f32 %v549, %v466
    %v581 = vmul.f32 %v549, %v467
    %v582 = vmul.f32 %v553, %v468
    %v583 = vmul.f32 %v553, %v469
    %v584 = vmul.f32 %v557, %v470
    %v585 = vmul.f32 %v557, %v471
    %v586 = vmul.f32 %v561, %v472
    %v587 = vmul.f32 %v561, %v473
    %v588 = vmul.f32 %v565, %v474
    %v589 = vmul.f32 %v565, %v475
    %590 = vadd.xlane.f32.xlu0 %v574
    %v591 = vpop.xlane.xlu0 %590
    %592 = vadd.xlane.f32.xlu0 %v575
    %v593 = vpop.xlane.xlu0 %592
    %594 = vadd.xlane.f32.xlu0 %v576
    %v595 = vpop.xlane.xlu0 %594
    %596 = vadd.xlane.f32.xlu0 %v577
    %v597 = vpop.xlane.xlu0 %596
    %598 = vadd.xlane.f32.xlu0 %v578
    %v599 = vpop.xlane.xlu0 %598
    %600 = vadd.xlane.f32.xlu0 %v579
    %v601 = vpop.xlane.xlu0 %600
    %602 = vadd.xlane.f32.xlu0 %v580
    %v603 = vpop.xlane.xlu0 %602
    %604 = vadd.xlane.f32.xlu0 %v581
    %v605 = vpop.xlane.xlu0 %604
    %606 = vadd.xlane.f32.xlu0 %v582
    %v607 = vpop.xlane.xlu0 %606
    %608 = vadd.xlane.f32.xlu0 %v583
    %v609 = vpop.xlane.xlu0 %608
    %610 = vadd.xlane.f32.xlu0 %v584
    %v611 = vpop.xlane.xlu0 %610
    %612 = vadd.xlane.f32.xlu0 %v585
    %v613 = vpop.xlane.xlu0 %612
    %614 = vadd.xlane.f32.xlu0 %v586
    %v615 = vpop.xlane.xlu0 %614
    %616 = vadd.xlane.f32.xlu0 %v587
    %v617 = vpop.xlane.xlu0 %616
    %618 = vadd.xlane.f32.xlu0 %v588
    %v619 = vpop.xlane.xlu0 %618
    %620 = vadd.xlane.f32.xlu0 %v589
    %v621 = vpop.xlane.xlu0 %620
    %v638 = vlaneseq
    %v639 = vand.u32 %v638, 127
    %v640 = vlaneseq
    %v641 = vshrl.u32 %v640, 7
    %v642 = vsub.s32 %v639, %v641
    %v643 = vrot.slane %v591, %v642
    %v644 = vadd.s32 %v639, 4294967288
    %v645 = vlaneseq
    %v646 = vshrl.u32 %v645, 7
    %v647 = vsub.s32 %v644, %v646
    %v648 = vrot.slane %v593, %v647
    %vm649 = vcmask 130112
    %v650 = vsel %vm649, %v648, %v643
    %v651 = vlaneseq
    %v652 = vshrl.u32 %v651, 7
    %v653 = vsub.s32 %v639, %v652
    %v654 = vrot.slane %v595, %v653
    %v655 = vlaneseq
    %v656 = vshrl.u32 %v655, 7
    %v657 = vsub.s32 %v644, %v656
    %v658 = vrot.slane %v597, %v657
    %v659 = vsel %vm649, %v658, %v654
    %v660 = vlaneseq
    %v661 = vshrl.u32 %v660, 7
    %v662 = vsub.s32 %v639, %v661
    %v663 = vrot.slane %v599, %v662
    %v664 = vlaneseq
    %v665 = vshrl.u32 %v664, 7
    %v666 = vsub.s32 %v644, %v665
    %v667 = vrot.slane %v601, %v666
    %v668 = vsel %vm649, %v667, %v663
    %v669 = vlaneseq
    %v670 = vshrl.u32 %v669, 7
    %v671 = vsub.s32 %v639, %v670
    %v672 = vrot.slane %v603, %v671
    %v673 = vlaneseq
    %v674 = vshrl.u32 %v673, 7
    %v675 = vsub.s32 %v644, %v674
    %v676 = vrot.slane %v605, %v675
    %v677 = vsel %vm649, %v676, %v672
    %v678 = vlaneseq
    %v679 = vshrl.u32 %v678, 7
    %v680 = vsub.s32 %v639, %v679
    %v681 = vrot.slane %v607, %v680
    %v682 = vlaneseq
    %v683 = vshrl.u32 %v682, 7
    %v684 = vsub.s32 %v644, %v683
    %v685 = vrot.slane %v609, %v684
    %v686 = vsel %vm649, %v685, %v681
    %v687 = vlaneseq
    %v688 = vshrl.u32 %v687, 7
    %v689 = vsub.s32 %v639, %v688
    %v690 = vrot.slane %v611, %v689
    %v691 = vlaneseq
    %v692 = vshrl.u32 %v691, 7
    %v693 = vsub.s32 %v644, %v692
    %v694 = vrot.slane %v613, %v693
    %v695 = vsel %vm649, %v694, %v690
    %v696 = vlaneseq
    %v697 = vshrl.u32 %v696, 7
    %v698 = vsub.s32 %v639, %v697
    %v699 = vrot.slane %v615, %v698
    %v700 = vlaneseq
    %v701 = vshrl.u32 %v700, 7
    %v702 = vsub.s32 %v644, %v701
    %v703 = vrot.slane %v617, %v702
    %v704 = vsel %vm649, %v703, %v699
    %v705 = vlaneseq
    %v706 = vshrl.u32 %v705, 7
    %v707 = vsub.s32 %v639, %v706
    %v708 = vrot.slane %v619, %v707
    %v709 = vlaneseq
    %v710 = vshrl.u32 %v709, 7
    %v711 = vsub.s32 %v644, %v710
    %v712 = vrot.slane %v621, %v711
    %v713 = vsel %vm649, %v712, %v708
    %vm714 = vcmask 1041409
    %v715 = vsel %vm714, %v659, %v650
    %vm716 = vcmask 1042434
    %v717 = vsel %vm716, %v668, %v715
    %vm718 = vcmask 1043459
    %v719 = vsel %vm718, %v677, %v717
    %vm720 = vcmask 1044484
    %v721 = vsel %vm720, %v686, %v719
    %vm722 = vcmask 1045509
    %v723 = vsel %vm722, %v695, %v721
    %vm724 = vcmask 1046534
    %v725 = vsel %vm724, %v704, %v723
    %vm726 = vcmask 1047559
    %v727 = vsel %vm726, %v713, %v725
    %vm729 = vcmask 130048
    %v730 = vsel %vm729, %v727, -inf
    %731 = vmax.xlane.f32.xlu0 %v730
    %v732 = vpop.xlane.xlu0 %731
    %v734 = vlaneseq
    %v735 = vshrl.u32 %v734, 7
    %v736 = vsub.s32 0, %v735
    %v737 = vrot.slane %v732, %v736
    %v738 = vlaneseq
    %v739 = vshrl.u32 %v738, 7
    %v740 = vsub.s32 1, %v739
    %v741 = vrot.slane %v732, %v740
    %v742 = vlaneseq
    %v743 = vshrl.u32 %v742, 7
    %v744 = vsub.s32 2, %v743
    %v745 = vrot.slane %v732, %v744
    %v746 = vlaneseq
    %v747 = vshrl.u32 %v746, 7
    %v748 = vsub.s32 3, %v747
    %v749 = vrot.slane %v732, %v748
    %v750 = vlaneseq
    %v751 = vshrl.u32 %v750, 7
    %v752 = vsub.s32 4, %v751
    %v753 = vrot.slane %v732, %v752
    %v754 = vlaneseq
    %v755 = vshrl.u32 %v754, 7
    %v756 = vsub.s32 5, %v755
    %v757 = vrot.slane %v732, %v756
    %v758 = vlaneseq
    %v759 = vshrl.u32 %v758, 7
    %v760 = vsub.s32 6, %v759
    %v761 = vrot.slane %v732, %v760
    %v762 = vlaneseq
    %v763 = vshrl.u32 %v762, 7
    %v764 = vsub.s32 7, %v763
    %v765 = vrot.slane %v732, %v764
    %v774 = vsub.f32 %v591, %v737
    %v775 = vsub.f32 %v593, %v737
    %v776 = vsub.f32 %v595, %v741
    %v777 = vsub.f32 %v597, %v741
    %v778 = vsub.f32 %v599, %v745
    %v779 = vsub.f32 %v601, %v745
    %v780 = vsub.f32 %v603, %v749
    %v781 = vsub.f32 %v605, %v749
    %v782 = vsub.f32 %v607, %v753
    %v783 = vsub.f32 %v609, %v753
    %v784 = vsub.f32 %v611, %v757
    %v785 = vsub.f32 %v613, %v757
    %v786 = vsub.f32 %v615, %v761
    %v787 = vsub.f32 %v617, %v761
    %v788 = vsub.f32 %v619, %v765
    %v789 = vsub.f32 %v621, %v765
    %v790 = vmul.f32 %v774, 1.442695
    %v791 = vpow.pop %v790
    %v792 = vmul.f32 %v775, 1.442695
    %v793 = vpow.pop %v792
    %v794 = vmul.f32 %v776, 1.442695
    %v795 = vpow.pop %v794
    %v796 = vmul.f32 %v777, 1.442695
    %v797 = vpow.pop %v796
    %v798 = vmul.f32 %v778, 1.442695
    %v799 = vpow.pop %v798
    %v800 = vmul.f32 %v779, 1.442695
    %v801 = vpow.pop %v800
    %v802 = vmul.f32 %v780, 1.442695
    %v803 = vpow.pop %v802
    %v804 = vmul.f32 %v781, 1.442695
    %v805 = vpow.pop %v804
    %v806 = vmul.f32 %v782, 1.442695
    %v807 = vpow.pop %v806
    %v808 = vmul.f32 %v783, 1.442695
    %v809 = vpow.pop %v808
    %v810 = vmul.f32 %v784, 1.442695
    %v811 = vpow.pop %v810
    %v812 = vmul.f32 %v785, 1.442695
    %v813 = vpow.pop %v812
    %v814 = vmul.f32 %v786, 1.442695
    %v815 = vpow.pop %v814
    %v816 = vmul.f32 %v787, 1.442695
    %v817 = vpow.pop %v816
    %v818 = vmul.f32 %v788, 1.442695
    %v819 = vpow.pop %v818
    %v820 = vmul.f32 %v789, 1.442695
    %v821 = vpow.pop %v820
    %v822 = vld [vmem:[#allocation7] sm:$0xff]
    %v824 = vlaneseq
    %v825 = vshrl.u32 %v824, 7
    %v826 = vsub.s32 0, %v825
    %v827 = vrot.slane %v822, %v826
    %829 = vbcast.lane.b32.xlu0 %v827, 256
    %v830 = vpop.permute.xlu0 %829
    %s832 = sor.u32 256, 8
    %833 = vbcast.lane.b32.xlu0 %v827, %s832
    %v834 = vpop.permute.xlu0 %833
    %v835 = vlaneseq
    %v836 = vshrl.u32 %v835, 7
    %v837 = vsub.s32 1, %v836
    %v838 = vrot.slane %v822, %v837
    %840 = vbcast.lane.b32.xlu0 %v838, 256
    %v841 = vpop.permute.xlu0 %840
    %s843 = sor.u32 256, 8
    %844 = vbcast.lane.b32.xlu0 %v838, %s843
    %v845 = vpop.permute.xlu0 %844
    %v846 = vlaneseq
    %v847 = vshrl.u32 %v846, 7
    %v848 = vsub.s32 2, %v847
    %v849 = vrot.slane %v822, %v848
    %851 = vbcast.lane.b32.xlu0 %v849, 256
    %v852 = vpop.permute.xlu0 %851
    %s854 = sor.u32 256, 8
    %855 = vbcast.lane.b32.xlu0 %v849, %s854
    %v856 = vpop.permute.xlu0 %855
    %v857 = vlaneseq
    %v858 = vshrl.u32 %v857, 7
    %v859 = vsub.s32 3, %v858
    %v860 = vrot.slane %v822, %v859
    %862 = vbcast.lane.b32.xlu0 %v860, 256
    %v863 = vpop.permute.xlu0 %862
    %s865 = sor.u32 256, 8
    %866 = vbcast.lane.b32.xlu0 %v860, %s865
    %v867 = vpop.permute.xlu0 %866
    %v868 = vlaneseq
    %v869 = vshrl.u32 %v868, 7
    %v870 = vsub.s32 4, %v869
    %v871 = vrot.slane %v822, %v870
    %873 = vbcast.lane.b32.xlu0 %v871, 256
    %v874 = vpop.permute.xlu0 %873
    %s876 = sor.u32 256, 8
    %877 = vbcast.lane.b32.xlu0 %v871, %s876
    %v878 = vpop.permute.xlu0 %877
    %v879 = vlaneseq
    %v880 = vshrl.u32 %v879, 7
    %v881 = vsub.s32 5, %v880
    %v882 = vrot.slane %v822, %v881
    %884 = vbcast.lane.b32.xlu0 %v882, 256
    %v885 = vpop.permute.xlu0 %884
    %s887 = sor.u32 256, 8
    %888 = vbcast.lane.b32.xlu0 %v882, %s887
    %v889 = vpop.permute.xlu0 %888
    %v890 = vlaneseq
    %v891 = vshrl.u32 %v890, 7
    %v892 = vsub.s32 6, %v891
    %v893 = vrot.slane %v822, %v892
    %895 = vbcast.lane.b32.xlu0 %v893, 256
    %v896 = vpop.permute.xlu0 %895
    %s898 = sor.u32 256, 8
    %899 = vbcast.lane.b32.xlu0 %v893, %s898
    %v900 = vpop.permute.xlu0 %899
    %v901 = vlaneseq
    %v902 = vshrl.u32 %v901, 7
    %v903 = vsub.s32 7, %v902
    %v904 = vrot.slane %v822, %v903
    %906 = vbcast.lane.b32.xlu0 %v904, 256
    %v907 = vpop.permute.xlu0 %906
    %s909 = sor.u32 256, 8
    %910 = vbcast.lane.b32.xlu0 %v904, %s909
    %v911 = vpop.permute.xlu0 %910
    %v928 = vmul.f32 %v791, %v830
    %v929 = vmul.f32 %v793, %v834
    %v930 = vmul.f32 %v795, %v841
    %v931 = vmul.f32 %v797, %v845
    %v932 = vmul.f32 %v799, %v852
    %v933 = vmul.f32 %v801, %v856
    %v934 = vmul.f32 %v803, %v863
    %v935 = vmul.f32 %v805, %v867
    %v936 = vmul.f32 %v807, %v874
    %v937 = vmul.f32 %v809, %v878
    %v938 = vmul.f32 %v811, %v885
    %v939 = vmul.f32 %v813, %v889
    %v940 = vmul.f32 %v815, %v896
    %v941 = vmul.f32 %v817, %v900
    %v942 = vmul.f32 %v819, %v907
    %v943 = vmul.f32 %v821, %v911
    %960 = vset.pattern.permute.xlu0 0
    %961 = vperm.xlu0 %960, %v928
    %v962 = vpop.permute.xlu0 %961
    %963 = vset.pattern.permute.xlu0 0
    %964 = vperm.xlu0 %963, %v929
    %v965 = vpop.permute.xlu0 %964
    %966 = vset.pattern.permute.xlu0 0
    %967 = vperm.xlu0 %966, %v930
    %v968 = vpop.permute.xlu0 %967
    %969 = vset.pattern.permute.xlu0 0
    %970 = vperm.xlu0 %969, %v931
    %v971 = vpop.permute.xlu0 %970
    %972 = vset.pattern.permute.xlu0 0
    %973 = vperm.xlu0 %972, %v932
    %v974 = vpop.permute.xlu0 %973
    %975 = vset.pattern.permute.xlu0 0
    %976 = vperm.xlu0 %975, %v933
    %v977 = vpop.permute.xlu0 %976
    %978 = vset.pattern.permute.xlu0 0
    %979 = vperm.xlu0 %978, %v934
    %v980 = vpop.permute.xlu0 %979
    %981 = vset.pattern.permute.xlu0 0
    %982 = vperm.xlu0 %981, %v935
    %v983 = vpop.permute.xlu0 %982
    %984 = vset.pattern.permute.xlu0 0
    %985 = vperm.xlu0 %984, %v936
    %v986 = vpop.permute.xlu0 %985
    %987 = vset.pattern.permute.xlu0 0
    %988 = vperm.xlu0 %987, %v937
    %v989 = vpop.permute.xlu0 %988
    %990 = vset.pattern.permute.xlu0 0
    %991 = vperm.xlu0 %990, %v938
    %v992 = vpop.permute.xlu0 %991
    %993 = vset.pattern.permute.xlu0 0
    %994 = vperm.xlu0 %993, %v939
    %v995 = vpop.permute.xlu0 %994
    %996 = vset.pattern.permute.xlu0 0
    %997 = vperm.xlu0 %996, %v940
    %v998 = vpop.permute.xlu0 %997
    %999 = vset.pattern.permute.xlu0 0
    %1000 = vperm.xlu0 %999, %v941
    %v1001 = vpop.permute.xlu0 %1000
    %1002 = vset.pattern.permute.xlu0 0
    %1003 = vperm.xlu0 %1002, %v942
    %v1004 = vpop.permute.xlu0 %1003
    %1005 = vset.pattern.permute.xlu0 0
    %1006 = vperm.xlu0 %1005, %v943
    %v1007 = vpop.permute.xlu0 %1006
    %v1008 = vlaneseq
    %v1009 = vshrl.u32 %v1008, 7
    %v1010 = vsub.s32 %v639, %v1009
    %v1011 = vrot.slane %v962, %v1010
    %v1012 = vlaneseq
    %v1013 = vshrl.u32 %v1012, 7
    %v1014 = vsub.s32 %v644, %v1013
    %v1015 = vrot.slane %v965, %v1014
    %v1016 = vsel %vm649, %v1015, %v1011
    %v1017 = vlaneseq
    %v1018 = vshrl.u32 %v1017, 7
    %v1019 = vsub.s32 %v639, %v1018
    %v1020 = vrot.slane %v968, %v1019
    %v1021 = vlaneseq
    %v1022 = vshrl.u32 %v1021, 7
    %v1023 = vsub.s32 %v644, %v1022
    %v1024 = vrot.slane %v971, %v1023
    %v1025 = vsel %vm649, %v1024, %v1020
    %v1026 = vlaneseq
    %v1027 = vshrl.u32 %v1026, 7
    %v1028 = vsub.s32 %v639, %v1027
    %v1029 = vrot.slane %v974, %v1028
    %v1030 = vlaneseq
    %v1031 = vshrl.u32 %v1030, 7
    %v1032 = vsub.s32 %v644, %v1031
    %v1033 = vrot.slane %v977, %v1032
    %v1034 = vsel %vm649, %v1033, %v1029
    %v1035 = vlaneseq
    %v1036 = vshrl.u32 %v1035, 7
    %v1037 = vsub.s32 %v639, %v1036
    %v1038 = vrot.slane %v980, %v1037
    %v1039 = vlaneseq
    %v1040 = vshrl.u32 %v1039, 7
    %v1041 = vsub.s32 %v644, %v1040
    %v1042 = vrot.slane %v983, %v1041
    %v1043 = vsel %vm649, %v1042, %v1038
    %v1044 = vlaneseq
    %v1045 = vshrl.u32 %v1044, 7
    %v1046 = vsub.s32 %v639, %v1045
    %v1047 = vrot.slane %v986, %v1046
    %v1048 = vlaneseq
    %v1049 = vshrl.u32 %v1048, 7
    %v1050 = vsub.s32 %v644, %v1049
    %v1051 = vrot.slane %v989, %v1050
    %v1052 = vsel %vm649, %v1051, %v1047
    %v1053 = vlaneseq
    %v1054 = vshrl.u32 %v1053, 7
    %v1055 = vsub.s32 %v639, %v1054
    %v1056 = vrot.slane %v992, %v1055
    %v1057 = vlaneseq
    %v1058 = vshrl.u32 %v1057, 7
    %v1059 = vsub.s32 %v644, %v1058
    %v1060 = vrot.slane %v995, %v1059
    %v1061 = vsel %vm649, %v1060, %v1056
    %v1062 = vlaneseq
    %v1063 = vshrl.u32 %v1062, 7
    %v1064 = vsub.s32 %v639, %v1063
    %v1065 = vrot.slane %v998, %v1064
    %v1066 = vlaneseq
    %v1067 = vshrl.u32 %v1066, 7
    %v1068 = vsub.s32 %v644, %v1067
    %v1069 = vrot.slane %v1001, %v1068
    %v1070 = vsel %vm649, %v1069, %v1065
    %v1071 = vlaneseq
    %v1072 = vshrl.u32 %v1071, 7
    %v1073 = vsub.s32 %v639, %v1072
    %v1074 = vrot.slane %v1004, %v1073
    %v1075 = vlaneseq
    %v1076 = vshrl.u32 %v1075, 7
    %v1077 = vsub.s32 %v644, %v1076
    %v1078 = vrot.slane %v1007, %v1077
    %v1079 = vsel %vm649, %v1078, %v1074
    %v1080 = vsel %vm714, %v1025, %v1016
    %v1081 = vsel %vm716, %v1034, %v1080
    %v1082 = vsel %vm718, %v1043, %v1081
    %v1083 = vsel %vm720, %v1052, %v1082
    %v1084 = vsel %vm722, %v1061, %v1083
    %v1085 = vsel %vm724, %v1070, %v1084
    %v1086 = vsel %vm726, %v1079, %v1085
    %v1088 = vsel %vm729, %v1086, 0.0
    %1089 = vadd.xlane.f32.xlu0 %v1088
    %v1090 = vpop.xlane.xlu0 %1089
    %v1091 = vmax.f32 %v1090, 1e-30
    %v1092 = vrcp.pop %v1091
    %v1094 = vlaneseq
    %v1095 = vshrl.u32 %v1094, 7
    %v1096 = vsub.s32 0, %v1095
    %v1097 = vrot.slane %v1092, %v1096
    %v1098 = vlaneseq
    %v1099 = vshrl.u32 %v1098, 7
    %v1100 = vsub.s32 1, %v1099
    %v1101 = vrot.slane %v1092, %v1100
    %v1102 = vlaneseq
    %v1103 = vshrl.u32 %v1102, 7
    %v1104 = vsub.s32 2, %v1103
    %v1105 = vrot.slane %v1092, %v1104
    %v1106 = vlaneseq
    %v1107 = vshrl.u32 %v1106, 7
    %v1108 = vsub.s32 3, %v1107
    %v1109 = vrot.slane %v1092, %v1108
    %v1110 = vlaneseq
    %v1111 = vshrl.u32 %v1110, 7
    %v1112 = vsub.s32 4, %v1111
    %v1113 = vrot.slane %v1092, %v1112
    %v1114 = vlaneseq
    %v1115 = vshrl.u32 %v1114, 7
    %v1116 = vsub.s32 5, %v1115
    %v1117 = vrot.slane %v1092, %v1116
    %v1118 = vlaneseq
    %v1119 = vshrl.u32 %v1118, 7
    %v1120 = vsub.s32 6, %v1119
    %v1121 = vrot.slane %v1092, %v1120
    %v1122 = vlaneseq
    %v1123 = vshrl.u32 %v1122, 7
    %v1124 = vsub.s32 7, %v1123
    %v1125 = vrot.slane %v1092, %v1124
    %v1134 = vmul.f32 %v928, %v1097
    %v1135 = vmul.f32 %v929, %v1097
    %v1136 = vmul.f32 %v930, %v1101
    %v1137 = vmul.f32 %v931, %v1101
    %v1138 = vmul.f32 %v932, %v1105
    %v1139 = vmul.f32 %v933, %v1105
    %v1140 = vmul.f32 %v934, %v1109
    %v1141 = vmul.f32 %v935, %v1109
    %v1142 = vmul.f32 %v936, %v1113
    %v1143 = vmul.f32 %v937, %v1113
    %v1144 = vmul.f32 %v938, %v1117
    %v1145 = vmul.f32 %v939, %v1117
    %v1146 = vmul.f32 %v940, %v1121
    %v1147 = vmul.f32 %v941, %v1121
    %v1148 = vmul.f32 %v942, %v1125
    %v1149 = vmul.f32 %v943, %v1125
    %v1150 = vunpack.c.l.bf16 %v115
    %v1151 = vunpack.c.l.bf16 %v116
    %v1152 = vunpack.c.l.bf16 %v117
    %v1153 = vunpack.c.l.bf16 %v118
    %v1154 = vunpack.c.l.bf16 %v119
    %v1155 = vunpack.c.l.bf16 %v120
    %v1156 = vunpack.c.l.bf16 %v121
    %v1157 = vunpack.c.l.bf16 %v122
    %v1158 = vunpack.c.l.bf16 %v123
    %v1159 = vunpack.c.l.bf16 %v124
    %v1160 = vunpack.c.l.bf16 %v125
    %v1161 = vunpack.c.l.bf16 %v126
    %v1162 = vunpack.c.l.bf16 %v127
    %v1163 = vunpack.c.l.bf16 %v128
    %v1164 = vunpack.c.l.bf16 %v129
    %v1165 = vunpack.c.l.bf16 %v130
    %1167 = vset.pattern.permute.xlu0 0
    %1168 = vperm.xlu0 %1167, %v1134
    %v1169 = vpop.permute.xlu0 %1168
    %1172 = vset.pattern.permute.xlu0 0
    %1173 = vperm.xlu0 %1172, %v1135
    %v1174 = vpop.permute.xlu0 %1173
    %1177 = vset.pattern.permute.xlu0 0
    %1178 = vperm.xlu0 %1177, %v1136
    %v1179 = vpop.permute.xlu0 %1178
    %1182 = vset.pattern.permute.xlu0 0
    %1183 = vperm.xlu0 %1182, %v1137
    %v1184 = vpop.permute.xlu0 %1183
    %1187 = vset.pattern.permute.xlu0 0
    %1188 = vperm.xlu0 %1187, %v1138
    %v1189 = vpop.permute.xlu0 %1188
    %1192 = vset.pattern.permute.xlu0 0
    %1193 = vperm.xlu0 %1192, %v1139
    %v1194 = vpop.permute.xlu0 %1193
    %1197 = vset.pattern.permute.xlu0 0
    %1198 = vperm.xlu0 %1197, %v1140
    %v1199 = vpop.permute.xlu0 %1198
    %1202 = vset.pattern.permute.xlu0 0
    %1203 = vperm.xlu0 %1202, %v1141
    %v1204 = vpop.permute.xlu0 %1203
    %1207 = vset.pattern.permute.xlu0 0
    %1208 = vperm.xlu0 %1207, %v1142
    %v1209 = vpop.permute.xlu0 %1208
    %1212 = vset.pattern.permute.xlu0 0
    %1213 = vperm.xlu0 %1212, %v1143
    %v1214 = vpop.permute.xlu0 %1213
    %1217 = vset.pattern.permute.xlu0 0
    %1218 = vperm.xlu0 %1217, %v1144
    %v1219 = vpop.permute.xlu0 %1218
    %1222 = vset.pattern.permute.xlu0 0
    %1223 = vperm.xlu0 %1222, %v1145
    %v1224 = vpop.permute.xlu0 %1223
    %1227 = vset.pattern.permute.xlu0 0
    %1228 = vperm.xlu0 %1227, %v1146
    %v1229 = vpop.permute.xlu0 %1228
    %1232 = vset.pattern.permute.xlu0 0
    %1233 = vperm.xlu0 %1232, %v1147
    %v1234 = vpop.permute.xlu0 %1233
    %1237 = vset.pattern.permute.xlu0 0
    %1238 = vperm.xlu0 %1237, %v1148
    %v1239 = vpop.permute.xlu0 %1238
    %1242 = vset.pattern.permute.xlu0 0
    %1243 = vperm.xlu0 %1242, %v1149
    %v1244 = vpop.permute.xlu0 %1243
    %v1246 = vmul.f32 %v1169, %v1150
    %v1247 = vmul.f32 %v1174, %v1151
    %v1248 = vmul.f32 %v1179, %v1152
    %v1249 = vmul.f32 %v1184, %v1153
    %v1250 = vmul.f32 %v1189, %v1154
    %v1251 = vmul.f32 %v1194, %v1155
    %v1252 = vmul.f32 %v1199, %v1156
    %v1253 = vmul.f32 %v1204, %v1157
    %v1254 = vmul.f32 %v1209, %v1158
    %v1255 = vmul.f32 %v1214, %v1159
    %v1256 = vmul.f32 %v1219, %v1160
    %v1257 = vmul.f32 %v1224, %v1161
    %v1258 = vmul.f32 %v1229, %v1162
    %v1259 = vmul.f32 %v1234, %v1163
    %v1260 = vmul.f32 %v1239, %v1164
    %v1261 = vmul.f32 %v1244, %v1165
    %v1262 = vadd.f32 %v1246, %v1247
    %v1263 = vrot.slane %v1262, 4
    %v1264 = vadd.f32 %v1262, %v1263
    %v1265 = vrot.slane %v1264, 2
    %v1266 = vadd.f32 %v1264, %v1265
    %v1267 = vrot.slane %v1266, 1
    %v1268 = vadd.f32 %v1266, %v1267
    %v1269 = vadd.f32 %v1248, %v1249
    %v1270 = vrot.slane %v1269, 4
    %v1271 = vadd.f32 %v1269, %v1270
    %v1272 = vrot.slane %v1271, 2
    %v1273 = vadd.f32 %v1271, %v1272
    %v1274 = vrot.slane %v1273, 1
    %v1275 = vadd.f32 %v1273, %v1274
    %v1276 = vadd.f32 %v1250, %v1251
    %v1277 = vrot.slane %v1276, 4
    %v1278 = vadd.f32 %v1276, %v1277
    %v1279 = vrot.slane %v1278, 2
    %v1280 = vadd.f32 %v1278, %v1279
    %v1281 = vrot.slane %v1280, 1
    %v1282 = vadd.f32 %v1280, %v1281
    %v1283 = vadd.f32 %v1252, %v1253
    %v1284 = vrot.slane %v1283, 4
    %v1285 = vadd.f32 %v1283, %v1284
    %v1286 = vrot.slane %v1285, 2
    %v1287 = vadd.f32 %v1285, %v1286
    %v1288 = vrot.slane %v1287, 1
    %v1289 = vadd.f32 %v1287, %v1288
    %v1290 = vadd.f32 %v1254, %v1255
    %v1291 = vrot.slane %v1290, 4
    %v1292 = vadd.f32 %v1290, %v1291
    %v1293 = vrot.slane %v1292, 2
    %v1294 = vadd.f32 %v1292, %v1293
    %v1295 = vrot.slane %v1294, 1
    %v1296 = vadd.f32 %v1294, %v1295
    %v1297 = vadd.f32 %v1256, %v1257
    %v1298 = vrot.slane %v1297, 4
    %v1299 = vadd.f32 %v1297, %v1298
    %v1300 = vrot.slane %v1299, 2
    %v1301 = vadd.f32 %v1299, %v1300
    %v1302 = vrot.slane %v1301, 1
    %v1303 = vadd.f32 %v1301, %v1302
    %v1304 = vadd.f32 %v1258, %v1259
    %v1305 = vrot.slane %v1304, 4
    %v1306 = vadd.f32 %v1304, %v1305
    %v1307 = vrot.slane %v1306, 2
    %v1308 = vadd.f32 %v1306, %v1307
    %v1309 = vrot.slane %v1308, 1
    %v1310 = vadd.f32 %v1308, %v1309
    %v1311 = vadd.f32 %v1260, %v1261
    %v1312 = vrot.slane %v1311, 4
    %v1313 = vadd.f32 %v1311, %v1312
    %v1314 = vrot.slane %v1313, 2
    %v1315 = vadd.f32 %v1313, %v1314
    %v1316 = vrot.slane %v1315, 1
    %v1317 = vadd.f32 %v1315, %v1316
    %v1318 = vpack.c.bf16 %v1268, %v1268
    %v1319 = vpack.c.bf16 %v1275, %v1275
    %v1320 = vpack.c.bf16 %v1282, %v1282
    %v1321 = vpack.c.bf16 %v1289, %v1289
    %v1322 = vpack.c.bf16 %v1296, %v1296
    %v1323 = vpack.c.bf16 %v1303, %v1303
    %v1324 = vpack.c.bf16 %v1310, %v1310
    %v1325 = vpack.c.bf16 %v1317, %v1317
    %v1326 = vld [vmem:[#allocation11] sm:$0xf]
    %v1327 = vld [vmem:[#allocation11 + $0x4] sm:$0xf]
    %v1328 = vld [vmem:[#allocation11 + $0x8] sm:$0xf]
    %v1329 = vld [vmem:[#allocation11 + $0xc] sm:$0xf]
    %v1330 = vld [vmem:[#allocation11 + $0x10] sm:$0xf]
    %v1331 = vld [vmem:[#allocation11 + $0x14] sm:$0xf]
    %v1332 = vld [vmem:[#allocation11 + $0x18] sm:$0xf]
    %v1333 = vld [vmem:[#allocation11 + $0x1c] sm:$0xf]
    %v1334 = vld [vmem:[#allocation11 + $0x20] sm:$0xf]
    %v1335 = vld [vmem:[#allocation11 + $0x24] sm:$0xf]
    %v1336 = vld [vmem:[#allocation11 + $0x28] sm:$0xf]
    %v1337 = vld [vmem:[#allocation11 + $0x2c] sm:$0xf]
    %v1338 = vld [vmem:[#allocation11 + $0x30] sm:$0xf]
    %v1339 = vld [vmem:[#allocation11 + $0x34] sm:$0xf]
    %v1340 = vld [vmem:[#allocation11 + $0x38] sm:$0xf]
    %v1341 = vld [vmem:[#allocation11 + $0x3c] sm:$0xf]
    %v1342 = vld [vmem:[%s9] sm:$0x1]
    %v1344 = vlaneseq
    %v1345 = vshrl.u32 %v1344, 7
    %v1346 = vsub.s32 0, %v1345
    %v1347 = vrot.slane %v1342, %v1346
    %v1357 = vunpack.c.l.b16 %v1318
    %v1358 = vunpack.c.l.b16 %v1319
    %v1359 = vunpack.c.l.b16 %v1320
    %v1360 = vunpack.c.l.b16 %v1321
    %v1361 = vunpack.c.l.b16 %v1322
    %v1362 = vunpack.c.l.b16 %v1323
    %v1363 = vunpack.c.l.b16 %v1324
    %v1364 = vunpack.c.l.b16 %v1325
    %v1365 = vsel %vm714, %v1358, %v1357
    %v1366 = vsel %vm716, %v1359, %v1365
    %v1367 = vsel %vm718, %v1360, %v1366
    %v1368 = vsel %vm720, %v1361, %v1367
    %v1369 = vsel %vm722, %v1362, %v1368
    %v1370 = vsel %vm724, %v1363, %v1369
    %v1371 = vsel %vm726, %v1364, %v1370
    %v1372 = vpack.c.b16 %v1371, %v1371
    %v1390 = vunpack.c.l.b16 %v1326
    %v1391 = vunpack.c.l.b16 %v1327
    %v1392 = vunpack.c.l.b16 %v1328
    %v1393 = vunpack.c.l.b16 %v1329
    %v1394 = vunpack.c.l.b16 %v1330
    %v1395 = vunpack.c.l.b16 %v1331
    %v1396 = vunpack.c.l.b16 %v1332
    %v1397 = vunpack.c.l.b16 %v1333
    %v1398 = vunpack.c.l.b16 %v1334
    %v1399 = vunpack.c.l.b16 %v1335
    %v1400 = vunpack.c.l.b16 %v1336
    %v1401 = vunpack.c.l.b16 %v1337
    %v1402 = vunpack.c.l.b16 %v1338
    %v1403 = vunpack.c.l.b16 %v1339
    %v1404 = vunpack.c.l.b16 %v1340
    %v1405 = vunpack.c.l.b16 %v1341
    %v1406 = vpack.c.b16 %v1391, %v1390
    %v1407 = vpack.c.b16 %v1393, %v1392
    %v1408 = vpack.c.b16 %v1395, %v1394
    %v1409 = vpack.c.b16 %v1397, %v1396
    %v1410 = vpack.c.b16 %v1399, %v1398
    %v1411 = vpack.c.b16 %v1401, %v1400
    %v1412 = vpack.c.b16 %v1403, %v1402
    %v1413 = vpack.c.b16 %v1405, %v1404
    %1422 = vmatprep.subr.bf16.mxu0 0
    %1423 = vmatpush1.bf16.msra.mxu0 %v1406
    %1424 = vmatprep.subr.bf16.mxu0 0
    %1425 = vmatpush1.bf16.msra.mxu0 %v1407
    %1426 = vmatprep.subr.bf16.mxu0 0
    %1427 = vmatpush1.bf16.msra.mxu0 %v1408
    %1428 = vmatprep.subr.bf16.mxu0 0
    %1429 = vmatpush1.bf16.msra.mxu0 %v1409
    %1430 = vmatprep.subr.bf16.mxu0 0
    %1431 = vmatpush1.bf16.msra.mxu0 %v1410
    %1432 = vmatprep.subr.bf16.mxu0 0
    %1433 = vmatpush1.bf16.msra.mxu0 %v1411
    %1434 = vmatprep.subr.bf16.mxu0 0
    %1435 = vmatpush1.bf16.msra.mxu0 %v1412
    %1436 = vmatprep.subr.bf16.mxu0 0
    %1437 = vmatpush1.bf16.msra.mxu0 %v1413
    %1438 = vmatprep.subr.bf16.mxu0 0
    %1439 = vmatpush1.bf16.msra.mxu0 0
    %1440 = vmatprep.subr.bf16.mxu0 0
    %1441 = vmatpush1.bf16.msra.mxu0 0
    %1442 = vmatprep.subr.bf16.mxu0 0
    %1443 = vmatpush1.bf16.msra.mxu0 0
    %1444 = vmatprep.subr.bf16.mxu0 0
    %1445 = vmatpush1.bf16.msra.mxu0 0
    %1446 = vmatprep.subr.bf16.mxu0 0
    %1447 = vmatpush1.bf16.msra.mxu0 0
    %1448 = vmatprep.subr.bf16.mxu0 0
    %1449 = vmatpush1.bf16.msra.mxu0 0
    %1450 = vmatprep.subr.bf16.mxu0 0
    %1451 = vmatpush1.bf16.msra.mxu0 0
    %1452 = vmatprep.subr.bf16.mxu0 0
    %1453 = vmatpush1.bf16.msra.mxu0 0
    %1454 = vmatprep.mubr.bf16.mxu0 0
    %1455 = vmatmul.mubr.bf16.gmra.mrb[0].mxu0 %v1372
    %v1456 = vpop.f32.mrb[0].mxu0
    %v1457 = vadd.f32 %v1347, %v1456
    %v1458 = vpop.f32.mrb[0].mxu0
    %v1459 = vpop.f32.mrb[0].mxu0
    %v1460 = vpop.f32.mrb[0].mxu0
    %1461 = vdwg.mxu0
    %v1462 = vtanh.pop %v1457
    %1463 = vst [vmem:[#allocation13] sm:$0xff] %v1462
    // Predicated region
    $region66: #{tpu_custom_call.1} parent=1 // pred_check
      _
    $region67: #{tpu_custom_call.1} parent=1 // pred_check_branch
      %1465 = sbr.rel (0) target = $region69
    $region68: #{tpu_custom_call.1} parent=1 // pred_region
      %s1467 = ssub.s32 128, 128
      %1468 = vsyncadd [#allocation4], %s1467
      %s1470 = sshll.u32 [#allocation13], 4
      %s1471 = int_to_ptr.vmem [resolvable:$true] %s1470
      %1473 = dma.vmem_to_hbm [thread:$0]  %s1471, 128, %s10, [#allocation4]
    $region69: #{tpu_custom_call.1} parent=1 // pred_fallthru
      _
    // Predicated region
    $region70: #{tpu_custom_call.1} parent=1 // pred_check
      _
    $region71: #{tpu_custom_call.1} parent=1 // pred_check_branch
      %1475 = sbr.rel (0) target = $region73
    $region72: #{tpu_custom_call.1} parent=1 // pred_region
      %1476 = dma.done [#allocation4], 128
    $region73: #{tpu_custom_call.1} parent=1 // pred_fallthru
      _
    %1477 = vsyncpa [#allocation3], 1
    %1478 = vsyncpa [#allocation6], 1
    %1479 = vsyncpa [#allocation9], 1
    %1480 = vsyncpa [#allocation12], 1
    %1481 = vsyncpa [#allocation4], 1

</llo_original>
